<compile_context>
chip_gen: v5e
topology: v5e:2x2
jax: 0.10.0
libtpu: 0.0.40
codegen_flags: <defaults>
</compile_context>

<pallas_src>
import functools

import jax
import jax.numpy as jnp
from jax import lax
from jax.experimental import pallas as pl
from jax.experimental.pallas import tpu as pltpu

# Large finite negative (not -inf) so fully-masked positions in later kv tiles
# underflow to exactly 0 in exp() without producing NaN/Inf arithmetic.
_MASK_VALUE = -1e30


def _attention_head_kernel(xq_ref, xkv_ref, wq_ref, wk_ref, wv_ref,
                           bq_ref, bk_ref, bv_ref, o_ref,
                           q_scr, m_scr, l_scr, acc_scr, *, tq, tk):
    """One (q-tile, kv-tile) step of causal single-head attention.

    xq_ref : (tq, C) bf16 -- x rows for this q tile
    xkv_ref: (tk, C) bf16 -- x rows for this kv tile
    w*_ref : (C, H)  bf16 -- projection weights (wq already scaled by C**-0.5)
    b*_ref : (1, H)  f32  -- projection biases  (bq already scaled)
    o_ref  : (tq, H) f32  -- output tile (written once, at the last kv step)
    q_scr  : (tq, H) bf16 -- q projection, computed once per q tile
    m_scr,l_scr : (tq, 1) f32 -- online-softmax running max / denom
    acc_scr: (tq, H) f32 -- online-softmax running numerator
    """
    qi = pl.program_id(1)
    ki = pl.program_id(2)
    nk = pl.num_programs(2)

    # --- new q tile: reset online-softmax state, project q once ---
    @pl.when(ki == 0)
    def _():
        m_scr[...] = jnp.full_like(m_scr, _MASK_VALUE)
        l_scr[...] = jnp.zeros_like(l_scr)
        acc_scr[...] = jnp.zeros_like(acc_scr)
        q = jnp.dot(xq_ref[...], wq_ref[...],
                    preferred_element_type=jnp.float32) + bq_ref[...]
        q_scr[...] = q.astype(q_scr.dtype)

    # --- skip kv tiles entirely above the causal diagonal ---
    @pl.when(ki * tk <= qi * tq + (tq - 1))
    def _():
        k = jnp.dot(xkv_ref[...], wk_ref[...],
                    preferred_element_type=jnp.float32) + bk_ref[...]
        v = jnp.dot(xkv_ref[...], wv_ref[...],
                    preferred_element_type=jnp.float32) + bv_ref[...]

        # Scores: contract over the head dim directly (no explicit k.T).
        s = lax.dot_general(q_scr[...], k.astype(jnp.bfloat16),
                            dimension_numbers=(((1,), (1,)), ((), ())),
                            preferred_element_type=jnp.float32)      # (tq, tk)

        # Causal mask on global positions: col <= row.
        row = qi * tq + lax.broadcasted_iota(jnp.int32, (tq, tk), 0)
        col = ki * tk + lax.broadcasted_iota(jnp.int32, (tq, tk), 1)
        s = jnp.where(col <= row, s, _MASK_VALUE)

        # Online softmax update (fp32 statistics).
        m_prev = m_scr[...]
        m_new = jnp.maximum(m_prev, jnp.max(s, axis=-1, keepdims=True))
        alpha = jnp.exp(m_prev - m_new)
        p = jnp.exp(s - m_new)
        l_scr[...] = alpha * l_scr[...] + jnp.sum(p, axis=-1, keepdims=True)
        acc_scr[...] = alpha * acc_scr[...] + jnp.dot(
            p.astype(jnp.bfloat16), v.astype(jnp.bfloat16),
            preferred_element_type=jnp.float32)
        m_scr[...] = m_new

    # --- finalize & write once per q tile (dropout == identity at inference) ---
    @pl.when(ki == nk - 1)
    def _():
        o_ref[...] = (acc_scr[...] *
                      pl.reciprocal(l_scr[...], approx=True)).astype(o_ref.dtype)


def attention_head(x, wq, bq, wk, bk, wv, bv, *, tq=None, tk=None):
    """x: (B, T, C) float32. wq/wk/wv: (C, H). bq/bk/bv: (H,). Returns (B, T, H)."""
    B, T, C = x.shape
    H = wq.shape[1]

    # Fold the softmax scale (C**-0.5, matching the module) into the q params:
    # removes the O(T^2) per-element VPU multiply on the score tile.
    scale = C ** -0.5
    wq_s = (wq * scale).astype(jnp.bfloat16)
    bq_s = (bq * scale).reshape(1, H).astype(jnp.float32)
    wk_b = wk.astype(jnp.bfloat16)
    bk_b = bk.reshape(1, H).astype(jnp.float32)
    wv_b = wv.astype(jnp.bfloat16)
    bv_b = bv.reshape(1, H).astype(jnp.float32)
    xb = x.astype(jnp.bfloat16)

    # Tile sizes: 256 keeps the fp32 score tile at 256 KiB and all per-step
    # temporaries well under the v7x 32 MiB scoped / v5e 16 MiB scoped budgets
    # while keeping MXU passes reasonably full.
    if tq is None:
        tq = min(T, 256)
    if tk is None:
        tk = min(T, 256)
    assert T % tq == 0 and T % tk == 0, "T must be divisible by the tile sizes"

    grid = (B, T // tq, T // tk)
    kernel = functools.partial(_attention_head_kernel, tq=tq, tk=tk)

    out = pl.pallas_call(
        kernel,
        out_shape=jax.ShapeDtypeStruct((B, T, H), jnp.float32),
        grid=grid,
        in_specs=[
            # x rows for the q tile / kv tile (double-buffered by Pallas).
            pl.BlockSpec((None, tq, C), lambda b, qi, ki: (b, qi, 0)),
            pl.BlockSpec((None, tk, C), lambda b, qi, ki: (b, ki, 0)),
            # Projection params: constant index_map -> resident in VMEM.
            pl.BlockSpec((C, H), lambda b, qi, ki: (0, 0)),   # wq (pre-scaled)
            pl.BlockSpec((C, H), lambda b, qi, ki: (0, 0)),   # wk
            pl.BlockSpec((C, H), lambda b, qi, ki: (0, 0)),   # wv
            pl.BlockSpec((1, H), lambda b, qi, ki: (0, 0)),   # bq (pre-scaled)
            pl.BlockSpec((1, H), lambda b, qi, ki: (0, 0)),   # bk
            pl.BlockSpec((1, H), lambda b, qi, ki: (0, 0)),   # bv
        ],
        # Output block revisited across the kv (reduction) axis; written at the
        # last kv step.
        out_specs=pl.BlockSpec((None, tq, H), lambda b, qi, ki: (b, qi, 0)),
        scratch_shapes=[
            pltpu.VMEM((tq, H), jnp.bfloat16),   # q tile (reused across kv steps)
            pltpu.VMEM((tq, 1), jnp.float32),    # m (running max)
            pltpu.VMEM((tq, 1), jnp.float32),    # l (running denom)
            pltpu.VMEM((tq, H), jnp.float32),    # acc (running numerator)
        ],
        compiler_params=pltpu.CompilerParams(
            dimension_semantics=("parallel", "parallel", "arbitrary")),
    )(xb, xb, wq_s, wk_b, wv_b, bq_s, bk_b, bv_b)

    return out.astype(x.dtype)


def _reference(x, wq, bq, wk, bk, wv, bv):
    B, T, C = x.shape
    q = x @ wq + bq
    k = x @ wk + bk
    v = x @ wv + bv
    wei = jnp.einsum("bth,bsh->bts", q, k) * (C ** -0.5)
    mask = jnp.tril(jnp.ones((T, T), dtype=bool))
    wei = jnp.where(mask, wei, -jnp.inf)
    wei = jax.nn.softmax(wei, axis=-1)
    return jnp.einsum("bts,bsh->bth", wei, v)


if __name__ == "__main__":
    # small shapes consistent with the module
    B, T = 2, 8                      # batch, sequence length (context_size = T)
    num_embeddings = 32              # C
    head_size = 16                   # H
    dropout = 0.1                    # unused at inference

    key = jax.random.PRNGKey(0)
    kx, kq, kbq, kk, kbk, kv, kbv = jax.random.split(key, 7)

    x = jax.random.normal(kx, (B, T, num_embeddings), dtype=jnp.float32)

    # deterministic parameter init (nn.Linear shapes: weight (H, C), bias (H,));
    # pre-transposed to (C, H) for the kernel.
    scale = 1.0 / jnp.sqrt(num_embeddings)
    wq = (jax.random.uniform(kq, (num_embeddings, head_size), jnp.float32) * 2 - 1) * scale
    bq = (jax.random.uniform(kbq, (head_size,), jnp.float32) * 2 - 1) * scale
    wk = (jax.random.uniform(kk, (num_embeddings, head_size), jnp.float32) * 2 - 1) * scale
    bk = (jax.random.uniform(kbk, (head_size,), jnp.float32) * 2 - 1) * scale
    wv = (jax.random.uniform(kv, (num_embeddings, head_size), jnp.float32) * 2 - 1) * scale
    bv = (jax.random.uniform(kbv, (head_size,), jnp.float32) * 2 - 1) * scale

    out = attention_head(x, wq, bq, wk, bk, wv, bv)
    jax.block_until_ready(out)

    ref = _reference(x, wq, bq, wk, bk, wv, bv)
    assert out.shape == (B, T, head_size)
    # bf16 matmul operands (fp32 accumulation) -> loosened tolerance vs fp32 ref.
    assert jnp.allclose(out, ref, atol=2e-2, rtol=2e-2), "mismatch vs JAX reference"

    print("KERNEL_OK")
</pallas_src>

<mosaic_0001>
module attributes {stable_mosaic.version = 11 : i64} {
  func.func @_attention_head_kernel(%arg0: i32, %arg1: i32, %arg2: i32, %arg3: memref<1x8x32xbf16, #tpu.memory_space<vmem>>, %arg4: memref<1x8x32xbf16, #tpu.memory_space<vmem>>, %arg5: memref<32x16xbf16, #tpu.memory_space<vmem>>, %arg6: memref<32x16xbf16, #tpu.memory_space<vmem>>, %arg7: memref<32x16xbf16, #tpu.memory_space<vmem>>, %arg8: memref<1x16xf32, #tpu.memory_space<vmem>>, %arg9: memref<1x16xf32, #tpu.memory_space<vmem>>, %arg10: memref<1x16xf32, #tpu.memory_space<vmem>>, %arg11: memref<1x8x16xf32, #tpu.memory_space<vmem>>, %arg12: memref<8x16xbf16, #tpu.memory_space<vmem>>, %arg13: memref<8x1xf32, #tpu.memory_space<vmem>>, %arg14: memref<8x1xf32, #tpu.memory_space<vmem>>, %arg15: memref<8x16xf32, #tpu.memory_space<vmem>>) attributes {dimension_semantics = [#tpu.dimension_semantics<parallel>, #tpu.dimension_semantics<parallel>, #tpu.dimension_semantics<arbitrary>], iteration_bounds = array<i64: 2, 1, 1>, scalar_prefetch = 0 : i64, scratch_operands = 4 : i64, tpu.core_type = #tpu.core_type<tc>, window_params = [{transform_indices = @transform_0, window_bounds = array<i64: 1, 8, 32>}, {transform_indices = @transform_1, window_bounds = array<i64: 1, 8, 32>}, {pipeline_mode = #tpu.pipeline_mode<synchronous>, transform_indices = @transform_2, window_bounds = array<i64: 32, 16>}, {pipeline_mode = #tpu.pipeline_mode<synchronous>, transform_indices = @transform_3, window_bounds = array<i64: 32, 16>}, {pipeline_mode = #tpu.pipeline_mode<synchronous>, transform_indices = @transform_4, window_bounds = array<i64: 32, 16>}, {pipeline_mode = #tpu.pipeline_mode<synchronous>, transform_indices = @transform_5, window_bounds = array<i64: 1, 16>}, {pipeline_mode = #tpu.pipeline_mode<synchronous>, transform_indices = @transform_6, window_bounds = array<i64: 1, 16>}, {pipeline_mode = #tpu.pipeline_mode<synchronous>, transform_indices = @transform_7, window_bounds = array<i64: 1, 16>}, {transform_indices = @transform_8, window_bounds = array<i64: 1, 8, 16>}]} {
    %c0_i32 = arith.constant 0 : i32
    %0 = arith.cmpi eq, %arg2, %c0_i32 : i32
    %1 = arith.extui %0 : i1 to i32
    %c0_i32_0 = arith.constant 0 : i32
    %2 = arith.cmpi ne, %1, %c0_i32_0 : i32
    scf.if %2 {
      %cst = arith.constant -1.000000e+30 : f32
      %12 = vector.broadcast %cst : f32 to vector<8x1xf32>
      %c0 = arith.constant 0 : index
      %c0_5 = arith.constant 0 : index
      %13 = vector.load %arg13[%c0, %c0_5] : memref<8x1xf32, #tpu.memory_space<vmem>>, vector<8x1xf32>
      tpu.vector_store %arg13[%c0, %c0_5], %12 {strides = array<i32>} : memref<8x1xf32, #tpu.memory_space<vmem>>, vector<8x1xf32>,
      %cst_6 = arith.constant 0.000000e+00 : f32
      %14 = vector.broadcast %cst_6 : f32 to vector<8x1xf32>
      %c0_7 = arith.constant 0 : index
      %c0_8 = arith.constant 0 : index
      %15 = vector.load %arg14[%c0_7, %c0_8] : memref<8x1xf32, #tpu.memory_space<vmem>>, vector<8x1xf32>
      tpu.vector_store %arg14[%c0_7, %c0_8], %14 {strides = array<i32>} : memref<8x1xf32, #tpu.memory_space<vmem>>, vector<8x1xf32>,
      %cst_9 = arith.constant 0.000000e+00 : f32
      %16 = vector.broadcast %cst_9 : f32 to vector<8x16xf32>
      %c0_10 = arith.constant 0 : index
      %c0_11 = arith.constant 0 : index
      %17 = vector.load %arg15[%c0_10, %c0_11] : memref<8x16xf32, #tpu.memory_space<vmem>>, vector<8x16xf32>
      tpu.vector_store %arg15[%c0_10, %c0_11], %16 {strides = array<i32>} : memref<8x16xf32, #tpu.memory_space<vmem>>, vector<8x16xf32>,
      %c0_12 = arith.constant 0 : index
      %c0_13 = arith.constant 0 : index
      %c0_14 = arith.constant 0 : index
      %18 = vector.load %arg3[%c0_12, %c0_13, %c0_14] : memref<1x8x32xbf16, #tpu.memory_space<vmem>>, vector<1x8x32xbf16>
      %19 = vector.shape_cast %18 : vector<1x8x32xbf16> to vector<8x32xbf16>
      %c0_15 = arith.constant 0 : index
      %c0_16 = arith.constant 0 : index
      %20 = vector.load %arg5[%c0_15, %c0_16] : memref<32x16xbf16, #tpu.memory_space<vmem>>, vector<32x16xbf16>
      %cst_17 = arith.constant dense<0.000000e+00> : vector<8x16xf32>
      %21 = tpu.matmul %19, %20, %cst_17 {dimension_numbers = #tpu.dot_dimension_numbers<[1], [0], [0], [1], [0, 0, 1, 1], [], []>} : vector<8x32xbf16>, vector<32x16xbf16>, vector<8x16xf32> -> vector<8x16xf32>
      %c0_18 = arith.constant 0 : index
      %c0_19 = arith.constant 0 : index
      %22 = vector.load %arg8[%c0_18, %c0_19] : memref<1x16xf32, #tpu.memory_space<vmem>>, vector<1x16xf32>
      %23 = vector.broadcast %22 : vector<1x16xf32> to vector<8x16xf32>
      %24 = arith.addf %21, %23 : vector<8x16xf32>
      %25 = arith.truncf %24 : vector<8x16xf32> to vector<8x16xbf16>
      %c0_20 = arith.constant 0 : index
      %c0_21 = arith.constant 0 : index
      %26 = vector.load %arg12[%c0_20, %c0_21] : memref<8x16xbf16, #tpu.memory_space<vmem>>, vector<8x16xbf16>
      tpu.vector_store %arg12[%c0_20, %c0_21], %25 {strides = array<i32>} : memref<8x16xbf16, #tpu.memory_space<vmem>>, vector<8x16xbf16>,
    } else {
    }
    %c8_i32 = arith.constant 8 : i32
    %3 = arith.muli %arg2, %c8_i32 : i32
    %c8_i32_1 = arith.constant 8 : i32
    %4 = arith.muli %arg1, %c8_i32_1 : i32
    %c7_i32 = arith.constant 7 : i32
    %5 = arith.addi %4, %c7_i32 : i32
    %6 = arith.cmpi sle, %3, %5 : i32
    %7 = arith.extui %6 : i1 to i32
    %c0_i32_2 = arith.constant 0 : i32
    %8 = arith.cmpi ne, %7, %c0_i32_2 : i32
    scf.if %8 {
      %c0 = arith.constant 0 : index
      %c0_5 = arith.constant 0 : index
      %c0_6 = arith.constant 0 : index
      %12 = vector.load %arg4[%c0, %c0_5, %c0_6] : memref<1x8x32xbf16, #tpu.memory_space<vmem>>, vector<1x8x32xbf16>
      %13 = vector.shape_cast %12 : vector<1x8x32xbf16> to vector<8x32xbf16>
      %c0_7 = arith.constant 0 : index
      %c0_8 = arith.constant 0 : index
      %14 = vector.load %arg6[%c0_7, %c0_8] : memref<32x16xbf16, #tpu.memory_space<vmem>>, vector<32x16xbf16>
      %cst = arith.constant dense<0.000000e+00> : vector<8x16xf32>
      %15 = tpu.matmul %13, %14, %cst {dimension_numbers = #tpu.dot_dimension_numbers<[1], [0], [0], [1], [0, 0, 1, 1], [], []>} : vector<8x32xbf16>, vector<32x16xbf16>, vector<8x16xf32> -> vector<8x16xf32>
      %c0_9 = arith.constant 0 : index
      %c0_10 = arith.constant 0 : index
      %16 = vector.load %arg9[%c0_9, %c0_10] : memref<1x16xf32, #tpu.memory_space<vmem>>, vector<1x16xf32>
      %17 = vector.broadcast %16 : vector<1x16xf32> to vector<8x16xf32>
      %18 = arith.addf %15, %17 : vector<8x16xf32>
      %c0_11 = arith.constant 0 : index
      %c0_12 = arith.constant 0 : index
      %c0_13 = arith.constant 0 : index
      %19 = vector.load %arg4[%c0_11, %c0_12, %c0_13] : memref<1x8x32xbf16, #tpu.memory_space<vmem>>, vector<1x8x32xbf16>
      %20 = vector.shape_cast %19 : vector<1x8x32xbf16> to vector<8x32xbf16>
      %c0_14 = arith.constant 0 : index
      %c0_15 = arith.constant 0 : index
      %21 = vector.load %arg7[%c0_14, %c0_15] : memref<32x16xbf16, #tpu.memory_space<vmem>>, vector<32x16xbf16>
      %cst_16 = arith.constant dense<0.000000e+00> : vector<8x16xf32>
      %22 = tpu.matmul %20, %21, %cst_16 {dimension_numbers = #tpu.dot_dimension_numbers<[1], [0], [0], [1], [0, 0, 1, 1], [], []>} : vector<8x32xbf16>, vector<32x16xbf16>, vector<8x16xf32> -> vector<8x16xf32>
      %c0_17 = arith.constant 0 : index
      %c0_18 = arith.constant 0 : index
      %23 = vector.load %arg10[%c0_17, %c0_18] : memref<1x16xf32, #tpu.memory_space<vmem>>, vector<1x16xf32>
      %24 = vector.broadcast %23 : vector<1x16xf32> to vector<8x16xf32>
      %25 = arith.addf %22, %24 : vector<8x16xf32>
      %c0_19 = arith.constant 0 : index
      %c0_20 = arith.constant 0 : index
      %26 = vector.load %arg12[%c0_19, %c0_20] : memref<8x16xbf16, #tpu.memory_space<vmem>>, vector<8x16xbf16>
      %27 = arith.truncf %18 : vector<8x16xf32> to vector<8x16xbf16>
      %cst_21 = arith.constant dense<0.000000e+00> : vector<8x8xf32>
      %28 = tpu.matmul %26, %27, %cst_21 {dimension_numbers = #tpu.dot_dimension_numbers<[1], [1], [0], [0], [0, 0, 1, 0], [], []>} : vector<8x16xbf16>, vector<8x16xbf16>, vector<8x8xf32> -> vector<8x8xf32>
      %c8_i32_22 = arith.constant 8 : i32
      %29 = arith.muli %arg1, %c8_i32_22 : i32
      %30 = tpu.iota {dimensions = array<i32: 0>} : vector<8x8xi32>
      %31 = vector.broadcast %29 : i32 to vector<8x8xi32>
      %32 = arith.addi %31, %30 : vector<8x8xi32>
      %c8_i32_23 = arith.constant 8 : i32
      %33 = arith.muli %arg2, %c8_i32_23 : i32
      %34 = tpu.iota {dimensions = array<i32: 1>} : vector<8x8xi32>
      %35 = vector.broadcast %33 : i32 to vector<8x8xi32>
      %36 = arith.addi %35, %34 : vector<8x8xi32>
      %37 = arith.cmpi sle, %36, %32 : vector<8x8xi32>
      %cst_24 = arith.constant -1.000000e+30 : f32
      %38 = vector.broadcast %cst_24 : f32 to vector<8x8xf32>
      %39 = arith.select %37, %28, %38 : vector<8x8xi1>, vector<8x8xf32>
      %c0_25 = arith.constant 0 : index
      %c0_26 = arith.constant 0 : index
      %40 = vector.load %arg13[%c0_25, %c0_26] : memref<8x1xf32, #tpu.memory_space<vmem>>, vector<8x1xf32>
      %cst_27 = arith.constant dense<0xFF800000> : vector<8xf32>
      %41 = vector.multi_reduction <maximumf>, %39, %cst_27 [1] : vector<8x8xf32> to vector<8xf32>
      %42 = vector.shape_cast %41 : vector<8xf32> to vector<8x1xf32>
      %43 = arith.maximumf %40, %42 : vector<8x1xf32>
      %44 = arith.subf %40, %43 : vector<8x1xf32>
      %45 = math.exp %44 : vector<8x1xf32>
      %46 = vector.broadcast %43 : vector<8x1xf32> to vector<8x8xf32>
      %47 = arith.subf %39, %46 : vector<8x8xf32>
      %48 = math.exp %47 : vector<8x8xf32>
      %c0_28 = arith.constant 0 : index
      %c0_29 = arith.constant 0 : index
      %49 = vector.load %arg14[%c0_28, %c0_29] : memref<8x1xf32, #tpu.memory_space<vmem>>, vector<8x1xf32>
      %50 = arith.mulf %45, %49 : vector<8x1xf32>
      %cst_30 = arith.constant dense<0.000000e+00> : vector<8xf32>
      %51 = vector.multi_reduction <add>, %48, %cst_30 [1] : vector<8x8xf32> to vector<8xf32>
      %52 = vector.shape_cast %51 : vector<8xf32> to vector<8x1xf32>
      %53 = arith.addf %50, %52 : vector<8x1xf32>
      %c0_31 = arith.constant 0 : index
      %c0_32 = arith.constant 0 : index
      %54 = vector.load %arg14[%c0_31, %c0_32] : memref<8x1xf32, #tpu.memory_space<vmem>>, vector<8x1xf32>
      tpu.vector_store %arg14[%c0_31, %c0_32], %53 {strides = array<i32>} : memref<8x1xf32, #tpu.memory_space<vmem>>, vector<8x1xf32>,
      %c0_33 = arith.constant 0 : index
      %c0_34 = arith.constant 0 : index
      %55 = vector.load %arg15[%c0_33, %c0_34] : memref<8x16xf32, #tpu.memory_space<vmem>>, vector<8x16xf32>
      %56 = vector.broadcast %45 : vector<8x1xf32> to vector<8x16xf32>
      %57 = arith.mulf %56, %55 : vector<8x16xf32>
      %58 = arith.truncf %48 : vector<8x8xf32> to vector<8x8xbf16>
      %59 = arith.truncf %25 : vector<8x16xf32> to vector<8x16xbf16>
      %cst_35 = arith.constant dense<0.000000e+00> : vector<8x16xf32>
      %60 = tpu.matmul %58, %59, %cst_35 {dimension_numbers = #tpu.dot_dimension_numbers<[1], [0], [0], [1], [0, 0, 1, 1], [], []>} : vector<8x8xbf16>, vector<8x16xbf16>, vector<8x16xf32> -> vector<8x16xf32>
      %61 = arith.addf %57, %60 : vector<8x16xf32>
      %c0_36 = arith.constant 0 : index
      %c0_37 = arith.constant 0 : index
      %62 = vector.load %arg15[%c0_36, %c0_37] : memref<8x16xf32, #tpu.memory_space<vmem>>, vector<8x16xf32>
      tpu.vector_store %arg15[%c0_36, %c0_37], %61 {strides = array<i32>} : memref<8x16xf32, #tpu.memory_space<vmem>>, vector<8x16xf32>,
      %c0_38 = arith.constant 0 : index
      %c0_39 = arith.constant 0 : index
      %63 = vector.load %arg13[%c0_38, %c0_39] : memref<8x1xf32, #tpu.memory_space<vmem>>, vector<8x1xf32>
      tpu.vector_store %arg13[%c0_38, %c0_39], %43 {strides = array<i32>} : memref<8x1xf32, #tpu.memory_space<vmem>>, vector<8x1xf32>,
    } else {
    }
    %c0_i32_3 = arith.constant 0 : i32
    %9 = arith.cmpi eq, %arg2, %c0_i32_3 : i32
    %10 = arith.extui %9 : i1 to i32
    %c0_i32_4 = arith.constant 0 : i32
    %11 = arith.cmpi ne, %10, %c0_i32_4 : i32
    scf.if %11 {
      %c0 = arith.constant 0 : index
      %c0_5 = arith.constant 0 : index
      %12 = vector.load %arg15[%c0, %c0_5] : memref<8x16xf32, #tpu.memory_space<vmem>>, vector<8x16xf32>
      %c0_6 = arith.constant 0 : index
      %c0_7 = arith.constant 0 : index
      %13 = vector.load %arg14[%c0_6, %c0_7] : memref<8x1xf32, #tpu.memory_space<vmem>>, vector<8x1xf32>
      %14 = tpu.reciprocal %13 {approx = true} : vector<8x1xf32> -> vector<8x1xf32>
      %15 = vector.broadcast %14 : vector<8x1xf32> to vector<8x16xf32>
      %16 = arith.mulf %12, %15 : vector<8x16xf32>
      %c0_8 = arith.constant 0 : index
      %c0_9 = arith.constant 0 : index
      %c0_10 = arith.constant 0 : index
      %17 = vector.load %arg11[%c0_8, %c0_9, %c0_10] : memref<1x8x16xf32, #tpu.memory_space<vmem>>, vector<1x8x16xf32>
      %18 = vector.shape_cast %17 : vector<1x8x16xf32> to vector<8x16xf32>
      %19 = vector.shape_cast %16 : vector<8x16xf32> to vector<1x8x16xf32>
      tpu.vector_store %arg11[%c0_8, %c0_9, %c0_10], %19 {strides = array<i32>} : memref<1x8x16xf32, #tpu.memory_space<vmem>>, vector<1x8x16xf32>,
    } else {
    }
    return
  }
  func.func @transform_0(%arg0: i32, %arg1: i32, %arg2: i32) -> (i32, i32, i32) {
    %c0_i32 = arith.constant 0 : i32
    %c0_i32_0 = arith.constant 0 : i32
    return %arg0, %arg1, %c0_i32 : i32, i32, i32
  }
  func.func @transform_1(%arg0: i32, %arg1: i32, %arg2: i32) -> (i32, i32, i32) {
    %c0_i32 = arith.constant 0 : i32
    %c0_i32_0 = arith.constant 0 : i32
    return %arg0, %arg2, %c0_i32 : i32, i32, i32
  }
  func.func @transform_2(%arg0: i32, %arg1: i32, %arg2: i32) -> (i32, i32) {
    %c0_i32 = arith.constant 0 : i32
    %c0_i32_0 = arith.constant 0 : i32
    %c0_i32_1 = arith.constant 0 : i32
    return %c0_i32, %c0_i32_0 : i32, i32
  }
  func.func @transform_3(%arg0: i32, %arg1: i32, %arg2: i32) -> (i32, i32) {
    %c0_i32 = arith.constant 0 : i32
    %c0_i32_0 = arith.constant 0 : i32
    %c0_i32_1 = arith.constant 0 : i32
    return %c0_i32, %c0_i32_0 : i32, i32
  }
  func.func @transform_4(%arg0: i32, %arg1: i32, %arg2: i32) -> (i32, i32) {
    %c0_i32 = arith.constant 0 : i32
    %c0_i32_0 = arith.constant 0 : i32
    %c0_i32_1 = arith.constant 0 : i32
    return %c0_i32, %c0_i32_0 : i32, i32
  }
  func.func @transform_5(%arg0: i32, %arg1: i32, %arg2: i32) -> (i32, i32) {
    %c0_i32 = arith.constant 0 : i32
    %c0_i32_0 = arith.constant 0 : i32
    %c0_i32_1 = arith.constant 0 : i32
    return %c0_i32, %c0_i32_0 : i32, i32
  }
  func.func @transform_6(%arg0: i32, %arg1: i32, %arg2: i32) -> (i32, i32) {
    %c0_i32 = arith.constant 0 : i32
    %c0_i32_0 = arith.constant 0 : i32
    %c0_i32_1 = arith.constant 0 : i32
    return %c0_i32, %c0_i32_0 : i32, i32
  }
  func.func @transform_7(%arg0: i32, %arg1: i32, %arg2: i32) -> (i32, i32) {
    %c0_i32 = arith.constant 0 : i32
    %c0_i32_0 = arith.constant 0 : i32
    %c0_i32_1 = arith.constant 0 : i32
    return %c0_i32, %c0_i32_0 : i32, i32
  }
  func.func @transform_8(%arg0: i32, %arg1: i32, %arg2: i32) -> (i32, i32, i32) {
    %c0_i32 = arith.constant 0 : i32
    %c0_i32_0 = arith.constant 0 : i32
    return %arg0, %arg1, %c0_i32 : i32, i32, i32
  }
}

</mosaic_0001>

<llo_original>
// kernel: tpu_custom_call.1
$region0: #{tpu_custom_call.1}
  #allocation0 [shape = 'u32[]', space=smem, size = 0x4, offset = 0x4, fixed_abs, tag = 'smem constant byte address 0x4 - core index']
  #allocation1 [shape = 'u32[72,128]{1,0:T(1,128)}', space=vmem, size = 0x9000, scoped, tag = 'internal scratch']
  #allocation2 [shape = 'bf16[8,16]{1,0:T(8,128)(2,1)}', space=vmem, size = 0x800, scoped, tag = 'scratch operand']
  #allocation3 [shape = 'f32[8,1]{1,0:T(8,128)}', space=vmem, size = 0x1000, scoped, tag = 'scratch operand']
  #allocation4 [shape = 'f32[8,1]{1,0:T(8,128)}', space=vmem, size = 0x1000, scoped, tag = 'scratch operand']
  #allocation5 [shape = 'f32[8,16]{1,0:T(8,128)}', space=vmem, size = 0x1000, scoped, tag = 'scratch operand']
  %s0 = inlined_call_operand.vmem [shape: bf16[2,8,32], index: 0, kind: input, shape index: {}]
  %s1 = inlined_call_operand.vmem [shape: bf16[2,8,32], index: 1, kind: input, shape index: {}]
  %s2 = inlined_call_operand.vmem [shape: bf16[32,16], index: 2, kind: input, shape index: {}]
  %s3 = inlined_call_operand.vmem [shape: bf16[32,16], index: 3, kind: input, shape index: {}]
  %s4 = inlined_call_operand.vmem [shape: bf16[32,16], index: 4, kind: input, shape index: {}]
  %s5 = inlined_call_operand.vmem [shape: f32[1,16], index: 5, kind: input, shape index: {}]
  %s6 = inlined_call_operand.vmem [shape: f32[1,16], index: 6, kind: input, shape index: {}]
  %s7 = inlined_call_operand.vmem [shape: f32[1,16], index: 7, kind: input, shape index: {}]
  %s8 = inlined_call_operand.hbm [shape: f32[2,8,16], index: 8, kind: output, shape index: {}]
  %s9 = sld [smem:[#allocation0]]
  $region77: #{tpu_custom_call.1} parent=0
    _
  %s11 = ssub.s32 1, %s9
  %s12 = scalar_select 0, %s11, %s9
  $region1: #{tpu_custom_call.1} parent=0
    #allocation6 [shape = 'u8[8192]{0}', space=vmem, size = 0x2000, scoped, tag = 'output window, operand 0']
    #allocation7 [shape = 's32[2]{0}', space=sflag, size = 0x8, scoped, tag = 'scoped memory for tpu_custom_call.1']
    %13 = vsyncpa [#allocation7], 0
    %s14 = scalar_lea.sflag [#allocation7], 1
    %15 = vsyncpa %s14, 0
    loop: start=0, step=1, limit=4
    $region2: #{tpu_custom_call.1} parent=1 // loop_pre_header
      _
    $region3: #{tpu_custom_call.1} parent=1 // loop_header
      %s17 = sphi 0, %s21
      %p18 = scmp.ge.s32.totalorder %s17, 4
      %s24 = sphi 0, %s43
      %s25 = sphi 0, %s39
      %s26 = sphi 0, %s35
      %s27 = sphi 0, %s24
      %s28 = sphi 0, %s25
      %s29 = sphi 0, %s26
      %s30 = sphi 0, %s27
      %s31 = sphi 0, %s28
      %s32 = sphi 0, %s29
      %s48 = sphi 0, %s50
      %s51 = sphi 0, %s48
      %s52 = sphi 0, %s51
      %s68 = sphi 0, %s52
      %s76 = sphi 0, %s78
      %s79 = sphi 0, %s76
      %s80 = sphi 0, %s79
      %s96 = sphi 0, %s80
      %s100 = sphi 0, %s100
      %s102 = sphi 0, %s100
      %s103 = sphi 0, %s102
      %s117 = sphi 0, %s103
      %s121 = sphi 0, %s121
      %s123 = sphi 0, %s121
      %s124 = sphi 0, %s123
      %s138 = sphi 0, %s124
      %s142 = sphi 0, %s142
      %s144 = sphi 0, %s142
      %s145 = sphi 0, %s144
      %s159 = sphi 0, %s145
      %s163 = sphi 0, %s163
      %s165 = sphi 0, %s163
      %s166 = sphi 0, %s165
      %s180 = sphi 0, %s166
      %s184 = sphi 0, %s184
      %s186 = sphi 0, %s184
      %s187 = sphi 0, %s186
      %s201 = sphi 0, %s187
      %s205 = sphi 0, %s205
      %s207 = sphi 0, %s205
      %s208 = sphi 0, %s207
      %s222 = sphi 0, %s208
      %s230 = sphi 0, %s232
      %s233 = sphi 0, %s230
      %s234 = sphi 0, %s233
      %s250 = sphi 0, %s234
    $region4: #{tpu_custom_call.1} parent=1 // loop_header_branch
      %20 = sbr.rel (%p18) target = $region8
    $region5: #{tpu_custom_call.1} parent=1 // loop_body
      %s22 = ssub.s32 %s17, 1
      %s23 = ssub.s32 %s17, 2
      %s33 = sadd.s32 1, %s26
      %p34 = scmp.ge.s32.totalorder %s33, 1
      %s35 = scalar_select %p34, 0, %s33
      %s36 = sadd.s32 1, %s25
      %s37 = scalar_select %p34, %s36, %s25
      %p38 = scmp.ge.s32.totalorder %s37, 1
      %s39 = scalar_select %p38, 0, %s37
      %s40 = sadd.s32 1, %s24
      %s41 = scalar_select %p38, %s40, %s24
      %p42 = scmp.ge.s32.totalorder %s41, 2
      %s43 = scalar_select %p42, 0, %s41
      %s44 = ssub.s32 %s24, %s43
      %s45 = ssub.s32 %s25, %s39
      %s46 = sor.u32 %s44, %s45
      %p47 = scmp.eq.s32.totalorder %s46, 0
      %s49 = sadd.s32 %s48, 1
      %s50 = scalar_select %p47, %s48, %s49
      %p53 = pneg %p47
      %p54 = scmp.eq.s32.totalorder %s17, 1
      %p55 = por %p53, %p54
      %p56 = scmp.ne.s32.totalorder %s48, %s51
      %p57 = scmp.eq.s32.totalorder %s17, 0
      %p58 = por %p56, %p57
      %p59 = scmp.ne.s32.totalorder %s48, %s51
      %p60 = scmp.eq.s32.totalorder %s22, 1
      %p61 = por %p59, %p60
      %p62 = scmp.ne.s32.totalorder %s51, %s52
      %p63 = scmp.eq.s32.totalorder %s22, 0
      %p64 = por %p62, %p63
      %p65 = scmp.ne.s32.totalorder %s51, %s52
      %p66 = scmp.eq.s32.totalorder %s23, 1
      %p67 = por %p65, %p66
      %p69 = scmp.ne.s32.totalorder %s52, %s68
      %p70 = scmp.eq.s32.totalorder %s23, 0
      %p71 = por %p69, %p70
      %s72 = ssub.s32 %s24, %s43
      %s73 = ssub.s32 %s26, %s35
      %s74 = sor.u32 %s72, %s73
      %p75 = scmp.eq.s32.totalorder %s74, 0
      %s77 = sadd.s32 %s76, 1
      %s78 = scalar_select %p75, %s76, %s77
      %p81 = pneg %p75
      %p82 = scmp.eq.s32.totalorder %s17, 1
      %p83 = por %p81, %p82
      %p84 = scmp.ne.s32.totalorder %s76, %s79
      %p85 = scmp.eq.s32.totalorder %s17, 0
      %p86 = por %p84, %p85
      %p87 = scmp.ne.s32.totalorder %s76, %s79
      %p88 = scmp.eq.s32.totalorder %s22, 1
      %p89 = por %p87, %p88
      %p90 = scmp.ne.s32.totalorder %s79, %s80
      %p91 = scmp.eq.s32.totalorder %s22, 0
      %p92 = por %p90, %p91
      %p93 = scmp.ne.s32.totalorder %s79, %s80
      %p94 = scmp.eq.s32.totalorder %s23, 1
      %p95 = por %p93, %p94
      %p97 = scmp.ne.s32.totalorder %s80, %s96
      %p98 = scmp.eq.s32.totalorder %s23, 0
      %p99 = por %p97, %p98
      %s101 = sadd.s32 %s100, 1
      %p104 = scmp.eq.s32.totalorder %s17, 1
      %p105 = scmp.ne.s32.totalorder %s100, %s102
      %p106 = scmp.eq.s32.totalorder %s17, 0
      %p107 = por %p105, %p106
      %p108 = scmp.ne.s32.totalorder %s100, %s102
      %p109 = scmp.eq.s32.totalorder %s22, 1
      %p110 = por %p108, %p109
      %p111 = scmp.ne.s32.totalorder %s102, %s103
      %p112 = scmp.eq.s32.totalorder %s22, 0
      %p113 = por %p111, %p112
      %p114 = scmp.ne.s32.totalorder %s102, %s103
      %p115 = scmp.eq.s32.totalorder %s23, 1
      %p116 = por %p114, %p115
      %p118 = scmp.ne.s32.totalorder %s103, %s117
      %p119 = scmp.eq.s32.totalorder %s23, 0
      %p120 = por %p118, %p119
      %s122 = sadd.s32 %s121, 1
      %p125 = scmp.eq.s32.totalorder %s17, 1
      %p126 = scmp.ne.s32.totalorder %s121, %s123
      %p127 = scmp.eq.s32.totalorder %s17, 0
      %p128 = por %p126, %p127
      %p129 = scmp.ne.s32.totalorder %s121, %s123
      %p130 = scmp.eq.s32.totalorder %s22, 1
      %p131 = por %p129, %p130
      %p132 = scmp.ne.s32.totalorder %s123, %s124
      %p133 = scmp.eq.s32.totalorder %s22, 0
      %p134 = por %p132, %p133
      %p135 = scmp.ne.s32.totalorder %s123, %s124
      %p136 = scmp.eq.s32.totalorder %s23, 1
      %p137 = por %p135, %p136
      %p139 = scmp.ne.s32.totalorder %s124, %s138
      %p140 = scmp.eq.s32.totalorder %s23, 0
      %p141 = por %p139, %p140
      %s143 = sadd.s32 %s142, 1
      %p146 = scmp.eq.s32.totalorder %s17, 1
      %p147 = scmp.ne.s32.totalorder %s142, %s144
      %p148 = scmp.eq.s32.totalorder %s17, 0
      %p149 = por %p147, %p148
      %p150 = scmp.ne.s32.totalorder %s142, %s144
      %p151 = scmp.eq.s32.totalorder %s22, 1
      %p152 = por %p150, %p151
      %p153 = scmp.ne.s32.totalorder %s144, %s145
      %p154 = scmp.eq.s32.totalorder %s22, 0
      %p155 = por %p153, %p154
      %p156 = scmp.ne.s32.totalorder %s144, %s145
      %p157 = scmp.eq.s32.totalorder %s23, 1
      %p158 = por %p156, %p157
      %p160 = scmp.ne.s32.totalorder %s145, %s159
      %p161 = scmp.eq.s32.totalorder %s23, 0
      %p162 = por %p160, %p161
      %s164 = sadd.s32 %s163, 1
      %p167 = scmp.eq.s32.totalorder %s17, 1
      %p168 = scmp.ne.s32.totalorder %s163, %s165
      %p169 = scmp.eq.s32.totalorder %s17, 0
      %p170 = por %p168, %p169
      %p171 = scmp.ne.s32.totalorder %s163, %s165
      %p172 = scmp.eq.s32.totalorder %s22, 1
      %p173 = por %p171, %p172
      %p174 = scmp.ne.s32.totalorder %s165, %s166
      %p175 = scmp.eq.s32.totalorder %s22, 0
      %p176 = por %p174, %p175
      %p177 = scmp.ne.s32.totalorder %s165, %s166
      %p178 = scmp.eq.s32.totalorder %s23, 1
      %p179 = por %p177, %p178
      %p181 = scmp.ne.s32.totalorder %s166, %s180
      %p182 = scmp.eq.s32.totalorder %s23, 0
      %p183 = por %p181, %p182
      %s185 = sadd.s32 %s184, 1
      %p188 = scmp.eq.s32.totalorder %s17, 1
      %p189 = scmp.ne.s32.totalorder %s184, %s186
      %p190 = scmp.eq.s32.totalorder %s17, 0
      %p191 = por %p189, %p190
      %p192 = scmp.ne.s32.totalorder %s184, %s186
      %p193 = scmp.eq.s32.totalorder %s22, 1
      %p194 = por %p192, %p193
      %p195 = scmp.ne.s32.totalorder %s186, %s187
      %p196 = scmp.eq.s32.totalorder %s22, 0
      %p197 = por %p195, %p196
      %p198 = scmp.ne.s32.totalorder %s186, %s187
      %p199 = scmp.eq.s32.totalorder %s23, 1
      %p200 = por %p198, %p199
      %p202 = scmp.ne.s32.totalorder %s187, %s201
      %p203 = scmp.eq.s32.totalorder %s23, 0
      %p204 = por %p202, %p203
      %s206 = sadd.s32 %s205, 1
      %p209 = scmp.eq.s32.totalorder %s17, 1
      %p210 = scmp.ne.s32.totalorder %s205, %s207
      %p211 = scmp.eq.s32.totalorder %s17, 0
      %p212 = por %p210, %p211
      %p213 = scmp.ne.s32.totalorder %s205, %s207
      %p214 = scmp.eq.s32.totalorder %s22, 1
      %p215 = por %p213, %p214
      %p216 = scmp.ne.s32.totalorder %s207, %s208
      %p217 = scmp.eq.s32.totalorder %s22, 0
      %p218 = por %p216, %p217
      %p219 = scmp.ne.s32.totalorder %s207, %s208
      %p220 = scmp.eq.s32.totalorder %s23, 1
      %p221 = por %p219, %p220
      %p223 = scmp.ne.s32.totalorder %s208, %s222
      %p224 = scmp.eq.s32.totalorder %s23, 0
      %p225 = por %p223, %p224
      %s226 = ssub.s32 %s24, %s43
      %s227 = ssub.s32 %s25, %s39
      %s228 = sor.u32 %s226, %s227
      %p229 = scmp.eq.s32.totalorder %s228, 0
      %s231 = sadd.s32 %s230, 1
      %s232 = scalar_select %p229, %s230, %s231
      %p235 = pneg %p229
      %p236 = scmp.eq.s32.totalorder %s17, 1
      %p237 = por %p235, %p236
      %p238 = scmp.ne.s32.totalorder %s230, %s233
      %p239 = scmp.eq.s32.totalorder %s17, 0
      %p240 = por %p238, %p239
      %p241 = scmp.ne.s32.totalorder %s230, %s233
      %p242 = scmp.eq.s32.totalorder %s22, 1
      %p243 = por %p241, %p242
      %p244 = scmp.ne.s32.totalorder %s233, %s234
      %p245 = scmp.eq.s32.totalorder %s22, 0
      %p246 = por %p244, %p245
      %p247 = scmp.ne.s32.totalorder %s233, %s234
      %p248 = scmp.eq.s32.totalorder %s23, 1
      %p249 = por %p247, %p248
      %p251 = scmp.ne.s32.totalorder %s234, %s250
      %p252 = scmp.eq.s32.totalorder %s23, 0
      %p253 = por %p251, %p252
      %p254 = scmp.le.s32.totalorder 1, %s17
      %p255 = scmp.lt.s32.totalorder %s17, 3
      %p256 = pnand %p254, %p255
      %p257 = pneg %p256
      // Predicated region
      $region9: #{tpu_custom_call.1} parent=5 // pred_check
        _
      $region10: #{tpu_custom_call.1} parent=5 // pred_check_branch
        %259 = sbr.rel (%p256) target = $region12
      $region11: #{tpu_custom_call.1} parent=5 // pred_region
        %s260 = ssub.s32 %s17, 1
        // Predicated region
        $region13: #{tpu_custom_call.1} parent=11 // pred_check
          %p261 = pneg %p113
        $region14: #{tpu_custom_call.1} parent=11 // pred_check_branch
          %263 = sbr.rel (%p261) target = $region16
        $region15: #{tpu_custom_call.1} parent=11 // pred_region
          _
        $region16: #{tpu_custom_call.1} parent=11 // pred_fallthru
          _
        // Predicated region
        $region17: #{tpu_custom_call.1} parent=11 // pred_check
          %p264 = pneg %p134
        $region18: #{tpu_custom_call.1} parent=11 // pred_check_branch
          %266 = sbr.rel (%p264) target = $region20
        $region19: #{tpu_custom_call.1} parent=11 // pred_region
          _
        $region20: #{tpu_custom_call.1} parent=11 // pred_fallthru
          _
        // Predicated region
        $region21: #{tpu_custom_call.1} parent=11 // pred_check
          %p267 = pneg %p155
        $region22: #{tpu_custom_call.1} parent=11 // pred_check_branch
          %269 = sbr.rel (%p267) target = $region24
        $region23: #{tpu_custom_call.1} parent=11 // pred_region
          _
        $region24: #{tpu_custom_call.1} parent=11 // pred_fallthru
          _
        // Predicated region
        $region25: #{tpu_custom_call.1} parent=11 // pred_check
          %p270 = pneg %p176
        $region26: #{tpu_custom_call.1} parent=11 // pred_check_branch
          %272 = sbr.rel (%p270) target = $region28
        $region27: #{tpu_custom_call.1} parent=11 // pred_region
          _
        $region28: #{tpu_custom_call.1} parent=11 // pred_fallthru
          _
        // Predicated region
        $region29: #{tpu_custom_call.1} parent=11 // pred_check
          %p273 = pneg %p197
        $region30: #{tpu_custom_call.1} parent=11 // pred_check_branch
          %275 = sbr.rel (%p273) target = $region32
        $region31: #{tpu_custom_call.1} parent=11 // pred_region
          _
        $region32: #{tpu_custom_call.1} parent=11 // pred_fallthru
          _
        // Predicated region
        $region33: #{tpu_custom_call.1} parent=11 // pred_check
          %p276 = pneg %p218
        $region34: #{tpu_custom_call.1} parent=11 // pred_check_branch
          %278 = sbr.rel (%p276) target = $region36
        $region35: #{tpu_custom_call.1} parent=11 // pred_region
          _
        $region36: #{tpu_custom_call.1} parent=11 // pred_fallthru
          _
      $region12: #{tpu_custom_call.1} parent=5 // pred_fallthru
        _
      %p279 = scmp.lt.s32.totalorder %s17, 2
      // Predicated region
      $region37: #{tpu_custom_call.1} parent=5 // pred_check
        %p280 = pneg %p279
      $region38: #{tpu_custom_call.1} parent=5 // pred_check_branch
        %282 = sbr.rel (%p280) target = $region40
      $region39: #{tpu_custom_call.1} parent=5 // pred_region
        // Predicated region
        $region41: #{tpu_custom_call.1} parent=39 // pred_check
          %p283 = pneg %p58
        $region42: #{tpu_custom_call.1} parent=39 // pred_check_branch
          %285 = sbr.rel (%p283) target = $region44
        $region43: #{tpu_custom_call.1} parent=39 // pred_region
          %p286 = scmp.lt.s32.totalorder %s24, 1
          %s287 = scalar_select %p286, %s24, 1
          %p288 = scmp.lt.s32.totalorder %s25, 0
          %s289 = scalar_select %p288, %s25, 0
          %s290 = sadd.s32 %s289, %s287
          %s291 = smul.addr %s290, 4
          %s292 = scalar_lea.vmem %s0, %s291
        $region44: #{tpu_custom_call.1} parent=39 // pred_fallthru
          _
        // Predicated region
        $region45: #{tpu_custom_call.1} parent=39 // pred_check
          %p293 = pneg %p86
        $region46: #{tpu_custom_call.1} parent=39 // pred_check_branch
          %295 = sbr.rel (%p293) target = $region48
        $region47: #{tpu_custom_call.1} parent=39 // pred_region
          %p296 = scmp.lt.s32.totalorder %s24, 1
          %s297 = scalar_select %p296, %s24, 1
          %p298 = scmp.lt.s32.totalorder %s26, 0
          %s299 = scalar_select %p298, %s26, 0
          %s300 = sadd.s32 %s299, %s297
          %s301 = smul.addr %s300, 4
          %s302 = scalar_lea.vmem %s1, %s301
        $region48: #{tpu_custom_call.1} parent=39 // pred_fallthru
          _
      $region40: #{tpu_custom_call.1} parent=5 // pred_fallthru
        _
      %p303 = scmp.le.s32.totalorder 1, %s17
      %p304 = scmp.lt.s32.totalorder %s17, 3
      %p305 = pnand %p303, %p304
      %p306 = pneg %p305
      // Predicated region
      $region49: #{tpu_custom_call.1} parent=5 // pred_check
        _
      $region50: #{tpu_custom_call.1} parent=5 // pred_check_branch
        %308 = sbr.rel (%p305) target = $region52
      $region51: #{tpu_custom_call.1} parent=5 // pred_region
        %s309 = ssub.s32 %s17, 1
        %p310 = scmp.lt.s32.totalorder %s27, 1
        %s311 = scalar_select %p310, %s27, 1
        %p312 = scmp.lt.s32.totalorder %s28, 0
        %s313 = scalar_select %p312, %s28, 0
        %s314 = sadd.s32 %s313, %s311
        %s315 = smul.addr %s314, 4
        %s316 = scalar_lea.vmem %s0, %s315
        %p317 = pneg %p64
        %p318 = pneg %p61
        %p319 = scmp.lt.s32.totalorder %s27, 1
        %s320 = scalar_select %p319, %s27, 1
        %p321 = scmp.lt.s32.totalorder %s29, 0
        %s322 = scalar_select %p321, %s29, 0
        %s323 = sadd.s32 %s322, %s320
        %s324 = smul.addr %s323, 4
        %s325 = scalar_lea.vmem %s1, %s324
        %p326 = pneg %p92
        %p327 = pneg %p89
        %p328 = pneg %p113
        %p329 = pneg %p110
        %p330 = pneg %p134
        %p331 = pneg %p131
        %p332 = pneg %p155
        %p333 = pneg %p152
        %p334 = pneg %p176
        %p335 = pneg %p173
        %p336 = pneg %p197
        %p337 = pneg %p194
        %p338 = pneg %p218
        %p339 = pneg %p215
        %p340 = pneg %p246
        %p341 = pneg %p243
        %s342 = sand.u32 %s233, 1
        %s343 = scalar_lea.sflag [#allocation7], %s342
        %s344 = sand.u32 %s233, 1
        %s345 = smul.addr %s344, 8
        %s346 = scalar_lea.vmem [#allocation6], %s345
        %p347 = scmp.lt.s32.totalorder %s27, 1
        %s348 = scalar_select %p347, %s27, 1
        %p349 = scmp.lt.s32.totalorder %s28, 0
        %s350 = scalar_select %p349, %s28, 0
        %s351 = sadd.s32 %s350, %s348
        %s352 = smul.addr %s351, 4
        %s353 = scalar_lea.vmem %s0, %s352
        %p354 = scmp.lt.s32.totalorder %s27, 1
        %s355 = scalar_select %p354, %s27, 1
        %p356 = scmp.lt.s32.totalorder %s29, 0
        %s357 = scalar_select %p356, %s29, 0
        %s358 = sadd.s32 %s357, %s355
        %s359 = smul.addr %s358, 4
        %s360 = scalar_lea.vmem %s1, %s359
        %p362 = scmp.eq.s32.totalorder %s29, 0
        // Predicated region
        $region53: #{tpu_custom_call.1} parent=51 // pred_check
          %p363 = pneg %p362
        $region54: #{tpu_custom_call.1} parent=51 // pred_check_branch
          %365 = sbr.rel (%p363) target = $region56
        $region55: #{tpu_custom_call.1} parent=51 // pred_region
          %vm366 = vcmask 7168
          %367 = vst.msk [vmem:[#allocation3] sm:$0xff] %vm366, -1e+30
          %368 = vst.msk [vmem:[#allocation4] sm:$0xff] %vm366, 0.0
          %vm369 = vcmask 130048
          %370 = vst.msk [vmem:[#allocation5] sm:$0xff] %vm369, 0.0
          %v371 = vld [vmem:[%s353] sm:$0xf]
          %v372 = vld [vmem:[%s2] sm:$0xf]
          %v373 = vld [vmem:[%s2 + $0x4] sm:$0xf]
          %v374 = vld [vmem:[%s2 + $0x8] sm:$0xf]
          %v375 = vld [vmem:[%s2 + $0xc] sm:$0xf]
          %v376 = vld [vmem:[%s5] sm:$0x1]
          %v378 = vperm.slane %v376, 0
          %v384 = vunpack.c.l.b16 %v372
          %v385 = vunpack.c.l.b16 %v373
          %v386 = vunpack.c.l.b16 %v374
          %v387 = vunpack.c.l.b16 %v375
          %v388 = vpack.c.b16 %v385, %v384
          %v389 = vpack.c.b16 %v387, %v386
          %vm392 = vcmask 261120
          %v394 = vsel %vm392, %v371, 0
          %396 = vmatpush.bf16.msra.mxu0 0
          %397 = vmatpush.bf16.msra.mxu0 0
          %398 = vmatpush.bf16.msra.mxu0 0
          %399 = vmatpush.bf16.msra.mxu0 0
          %400 = vmatpush.bf16.msra.mxu0 0
          %401 = vmatpush.bf16.msra.mxu0 0
          %402 = vmatpush.bf16.msra.mxu0 %v389
          %403 = vmatpush.bf16.msra.mxu0 %v388
          %404 = vmatmul.bf16.gmra.mxu0 %v394
          %v405 = vpop.f32.mrf.mxu0
          %v406 = vadd.f32 %v378, %v405
          %v407 = vpop.f32.mrf.mxu0
          %408 = vdwg.mxu0
          %v409 = vpack.c.bf16 %v406, %v406
          %vm410 = vcmask 125952
          %411 = vst.msk [vmem:[#allocation2] sm:$0xf] %vm410, %v409
        $region56: #{tpu_custom_call.1} parent=51 // pred_fallthru
          _
        %s412 = smul.u32 %s29, 8
        %s413 = smul.u32 %s28, 8
        %s414 = sadd.s32 %s413, 7
        %p415 = scmp.le.s32.totalorder %s412, %s414
        // Predicated region
        $region57: #{tpu_custom_call.1} parent=51 // pred_check
          %p416 = pneg %p415
        $region58: #{tpu_custom_call.1} parent=51 // pred_check_branch
          %418 = sbr.rel (%p416) target = $region60
        $region59: #{tpu_custom_call.1} parent=51 // pred_region
          %v419 = vld [vmem:[%s360] sm:$0xf]
          %v420 = vld [vmem:[%s3] sm:$0xf]
          %v421 = vld [vmem:[%s3 + $0x4] sm:$0xf]
          %v422 = vld [vmem:[%s3 + $0x8] sm:$0xf]
          %v423 = vld [vmem:[%s3 + $0xc] sm:$0xf]
          %v424 = vld [vmem:[%s6] sm:$0x1]
          %v426 = vperm.slane %v424, 0
          %v432 = vunpack.c.l.b16 %v420
          %v433 = vunpack.c.l.b16 %v421
          %v434 = vunpack.c.l.b16 %v422
          %v435 = vunpack.c.l.b16 %v423
          %v436 = vpack.c.b16 %v433, %v432
          %v437 = vpack.c.b16 %v435, %v434
          %vm440 = vcmask 261120
          %v442 = vsel %vm440, %v419, 0
          %444 = vmatpush.bf16.msra.mxu0 0
          %445 = vmatpush.bf16.msra.mxu0 0
          %446 = vmatpush.bf16.msra.mxu0 0
          %447 = vmatpush.bf16.msra.mxu0 0
          %448 = vmatpush.bf16.msra.mxu0 0
          %449 = vmatpush.bf16.msra.mxu0 0
          %450 = vmatpush.bf16.msra.mxu0 %v437
          %451 = vmatpush.bf16.msra.mxu0 %v436
          %452 = vmatmul.bf16.gmra.mxu0 %v442
          %v453 = vpop.f32.mrf.mxu0
          %v454 = vadd.f32 %v426, %v453
          %v455 = vpop.f32.mrf.mxu0
          %456 = vdwg.mxu0
          %v457 = vld [vmem:[%s4] sm:$0xf]
          %v458 = vld [vmem:[%s4 + $0x4] sm:$0xf]
          %v459 = vld [vmem:[%s4 + $0x8] sm:$0xf]
          %v460 = vld [vmem:[%s4 + $0xc] sm:$0xf]
          %v461 = vld [vmem:[%s7] sm:$0x1]
          %v463 = vperm.slane %v461, 0
          %v469 = vunpack.c.l.b16 %v457
          %v470 = vunpack.c.l.b16 %v458
          %v471 = vunpack.c.l.b16 %v459
          %v472 = vunpack.c.l.b16 %v460
          %v473 = vpack.c.b16 %v470, %v469
          %v474 = vpack.c.b16 %v472, %v471
          %477 = vmatpush.bf16.msra.mxu0 0
          %478 = vmatpush.bf16.msra.mxu0 0
          %479 = vmatpush.bf16.msra.mxu0 0
          %480 = vmatpush.bf16.msra.mxu0 0
          %481 = vmatpush.bf16.msra.mxu0 0
          %482 = vmatpush.bf16.msra.mxu0 0
          %483 = vmatpush.bf16.msra.mxu0 %v474
          %484 = vmatpush.bf16.msra.mxu0 %v473
          %485 = vmatmul.bf16.gmra.mxu0 %v442
          %v486 = vpop.f32.mrf.mxu0
          %v487 = vadd.f32 %v463, %v486
          %v488 = vpop.f32.mrf.mxu0
          %489 = vdwg.mxu0
          %v490 = vld [vmem:[#allocation2] sm:$0xf]
          %v491 = vpack.c.bf16 %v454, %v454
          %vm492 = vcmask 130048
          %v494 = vsel %vm492, %v490, 0
          %v497 = vsel %vm492, %v491, 0
          %499 = vmatpush.bf16.xpose.msra.mxu0 0
          %500 = vmatpush.bf16.xpose.msra.mxu0 0
          %501 = vmatpush.bf16.xpose.msra.mxu0 0
          %502 = vmatpush.bf16.xpose.msra.mxu0 0
          %503 = vmatpush.bf16.xpose.msra.mxu0 0
          %504 = vmatpush.bf16.xpose.msra.mxu0 0
          %505 = vmatpush.bf16.xpose.msra.mxu0 0
          %506 = vmatpush.bf16.xpose.msra.mxu0 %v497
          %507 = vmatmul.bf16.gmra.mxu0 %v494
          %v508 = vpop.f32.mrf.mxu0
          %v509 = vadd.f32 0.0, %v508
          %v510 = vpop.f32.mrf.mxu0
          %511 = vdwg.mxu0
          %v512 = vlaneseq
          %v513 = vshrl.u32 %v512, 7
          %v514 = vstv %s413
          %v515 = vadd.s32 %v514, %v513
          %v516 = vlaneseq
          %v517 = vand.u32 %v516, 127
          %v518 = vstv %s412
          %v519 = vadd.s32 %v518, %v517
          %vm520 = vcmp.le.s32.totalorder %v519, %v515
          %v521 = vsel %vm520, %v509, -1e+30
          %v522 = vld [vmem:[#allocation3] sm:$0xff]
          %vm523 = vcmask 64512
          %v524 = vsel %vm523, %v521, -inf
          %525 = vmax.xlane.f32.xlu0 %v524
          %v526 = vpop.xlane.xlu0 %525
          %v527 = vmax.f32 %v522, %v526
          %v528 = vsub.f32 %v522, %v527
          %v529 = vmul.f32 %v528, 1.442695
          %v530 = vpow.pop %v529
          %532 = vset.pattern.permute.xlu0 0
          %533 = vperm.xlu0 %532, %v527
          %v534 = vpop.permute.xlu0 %533
          %v536 = vsub.f32 %v521, %v534
          %v537 = vmul.f32 %v536, 1.442695
          %v538 = vpow.pop %v537
          %v539 = vld [vmem:[#allocation4] sm:$0xff]
          %v540 = vmul.f32 %v530, %v539
          %v541 = vsel %vm523, %v538, 0.0
          %542 = vadd.xlane.f32.xlu0 %v541
          %v543 = vpop.xlane.xlu0 %542
          %v544 = vadd.f32 %v540, %v543
          %vm545 = vcmask 7168
          %546 = vst.msk [vmem:[#allocation4] sm:$0xff] %vm545, %v544
          %v547 = vld [vmem:[#allocation5] sm:$0xff]
          %549 = vset.pattern.permute.xlu0 0
          %550 = vperm.xlu0 %549, %v530
          %v551 = vpop.permute.xlu0 %550
          %v553 = vmul.f32 %v551, %v547
          %v554 = vpack.c.bf16 %v538, %v538
          %v555 = vpack.c.bf16 %v487, %v487
          %v557 = vsel %vm523, %v554, 0
          %vm559 = vcmask 1043456
          %v561 = vsel %vm559, %v555, 0
          %563 = vmatpush.bf16.msra.mxu0 0
          %564 = vmatpush.bf16.msra.mxu0 0
          %565 = vmatpush.bf16.msra.mxu0 0
          %566 = vmatpush.bf16.msra.mxu0 0
          %567 = vmatpush.bf16.msra.mxu0 0
          %568 = vmatpush.bf16.msra.mxu0 0
          %569 = vmatpush.bf16.msra.mxu0 0
          %570 = vmatpush.bf16.msra.mxu0 %v561
          %571 = vmatmul.bf16.gmra.mxu0 %v557
          %v572 = vpop.f32.mrf.mxu0
          %v573 = vadd.f32 0.0, %v572
          %v574 = vpop.f32.mrf.mxu0
          %575 = vdwg.mxu0
          %v576 = vadd.f32 %v553, %v573
          %577 = vst.msk [vmem:[#allocation5] sm:$0xff] %vm492, %v576
          %578 = vst.msk [vmem:[#allocation3] sm:$0xff] %vm545, %v527
        $region60: #{tpu_custom_call.1} parent=51 // pred_fallthru
          _
        // Predicated region
        $region61: #{tpu_custom_call.1} parent=51 // pred_check
          %p579 = pneg %p362
        $region62: #{tpu_custom_call.1} parent=51 // pred_check_branch
          %581 = sbr.rel (%p579) target = $region64
        $region63: #{tpu_custom_call.1} parent=51 // pred_region
          %v582 = vld [vmem:[#allocation5] sm:$0xff]
          %v583 = vld [vmem:[#allocation4] sm:$0xff]
          %v584 = vrcp.pop %v583
          %586 = vset.pattern.permute.xlu0 0
          %587 = vperm.xlu0 %586, %v584
          %v588 = vpop.permute.xlu0 %587
          %v590 = vmul.f32 %v582, %v588
          %vm591 = vcmask 130048
          %592 = vst.msk [vmem:[%s346] sm:$0xff] %vm591, %v590
        $region64: #{tpu_custom_call.1} parent=51 // pred_fallthru
          _
        %s593 = sand.u32 %s233, 1
        %s594 = scalar_lea.sflag [#allocation7], %s593
        %s595 = sand.u32 %s233, 1
        %s596 = smul.addr %s595, 8
        %s597 = scalar_lea.vmem [#allocation6], %s596
        // Predicated region
        $region65: #{tpu_custom_call.1} parent=51 // pred_check
          %p598 = pneg %p243
        $region66: #{tpu_custom_call.1} parent=51 // pred_check_branch
          %600 = sbr.rel (%p598) target = $region68
        $region67: #{tpu_custom_call.1} parent=51 // pred_region
          %602 = vsyncadd %s594, 0
          %s603 = sadd.s32 %s28, %s27
          %s604 = smul.addr %s603, 8
          %s605 = scalar_lea.hbm %s8, %s604
          %s607 = sshll.u32 %s597, 4
          %s608 = int_to_ptr.vmem [resolvable:$true] %s607
          %s609 = sshll.u32 %s605, 4
          %s610 = int_to_ptr.hbm [resolvable:$true] %s609
          %612 = dma.vmem_to_hbm [thread:$0]  %s608, 128, %s610, %s594
        $region68: #{tpu_custom_call.1} parent=51 // pred_fallthru
          _
      $region52: #{tpu_custom_call.1} parent=5 // pred_fallthru
        _
      %p613 = scmp.le.s32.totalorder 2, %s17
      // Predicated region
      $region69: #{tpu_custom_call.1} parent=5 // pred_check
        %p614 = pneg %p613
      $region70: #{tpu_custom_call.1} parent=5 // pred_check_branch
        %616 = sbr.rel (%p614) target = $region72
      $region71: #{tpu_custom_call.1} parent=5 // pred_region
        %s617 = ssub.s32 %s17, 2
        // Predicated region
        $region73: #{tpu_custom_call.1} parent=71 // pred_check
          %p618 = pneg %p249
        $region74: #{tpu_custom_call.1} parent=71 // pred_check_branch
          %620 = sbr.rel (%p618) target = $region76
        $region75: #{tpu_custom_call.1} parent=71 // pred_region
          %s621 = sand.u32 %s234, 1
          %s622 = scalar_lea.sflag [#allocation7], %s621
          %s623 = sand.u32 %s234, 1
          %s624 = smul.addr %s623, 8
          %s625 = scalar_lea.vmem [#allocation6], %s624
          %627 = dma.done %s622, 128
        $region76: #{tpu_custom_call.1} parent=71 // pred_fallthru
          _
      $region72: #{tpu_custom_call.1} parent=5 // pred_fallthru
        _
    $region6: #{tpu_custom_call.1} parent=1 // loop_footer
      %s21 = sadd.s32 1, %s17
    $region7: #{tpu_custom_call.1} parent=1 // loop_footer_branch
      %16 = sbr.rel target = $region3
    $region8: #{tpu_custom_call.1} parent=1 // loop_exit
      _
    %628 = vsyncpa [#allocation7], 1
    %s629 = scalar_lea.sflag [#allocation7], 1
    %630 = vsyncpa %s629, 1

</llo_original>
